<compile_context>
chip_gen: v6e
topology: v6e:2x2x1
jax: 0.10.0
libtpu: 0.0.40
codegen_flags: <defaults>
</compile_context>

<pallas_src>
import math

import jax
import jax.numpy as jnp
from jax.experimental import pallas as pl
from jax.experimental.pallas import tpu as pltpu


_SQRT_2_OVER_PI = math.sqrt(2.0 / math.pi)


def _gelu_new(x):
    # Matches HF ACT2FN["gelu_new"] (tanh approximation) used by Phi-2.
    return 0.5 * x * (1.0 + jnp.tanh(_SQRT_2_OVER_PI * (x + 0.044715 * x * x * x)))


def _round_up(x, m):
    return (x + m - 1) // m * m


def _tpu_generation_defaults():
    """(tm, tn, vmem_capacity_bytes, n_tensorcores) derived from the device."""
    kind = ""
    try:
        kind = jax.devices()[0].device_kind.lower()
    except Exception:
        pass
    vmem_cap = None
    try:
        vmem_cap = int(pltpu.get_tpu_info().vmem_capacity_bytes)
    except Exception:
        vmem_cap = None

    if "v7" in kind:
        tm, tn, cores = 512, 1024, 2          # 64 MiB VMEM / TC, 2 TCs
        vmem_cap = vmem_cap or (64 << 20)
    elif "v6" in kind:
        tm, tn, cores = 1024, 1024, 1         # needs ~650 FLOPs/byte -> big tm
        vmem_cap = vmem_cap or (128 << 20)
    elif "v5" in kind or "v4" in kind:
        cores = 2 if ("v5p" in kind or "v4" in kind) else 1
        tm, tn = 512, 1024
        vmem_cap = vmem_cap or (128 << 20)
    else:
        tm, tn, cores = 512, 1024, 1
        vmem_cap = vmem_cap or (64 << 20)     # conservative default
    return tm, tn, vmem_cap, cores


def _mlp_kernel(x_ref, w1_ref, b1_ref, w2_ref, b2_ref, o_ref, acc_ref):
    # Grid step (i, j):
    #   x_ref  : (tm, D)  compute dtype  -- constant across j (reused)
    #   w1_ref : (D, tn)  compute dtype  -- j-th column tile of W1
    #   b1_ref : (1, tn)  f32            -- j-th slice of b1
    #   w2_ref : (tn, D)  compute dtype  -- j-th row tile of W2
    #   b2_ref : (1, D)   f32            -- added once, on last j
    #   o_ref  : (tm, D)  out dtype      -- written once, on last j
    #   acc_ref: (tm, D)  f32 accumulator over the n_inner axis
    j = pl.program_id(1)

    @pl.when(j == 0)
    def _():
        acc_ref[...] = jnp.zeros_like(acc_ref)

    # fc1 chunk + gelu_new on the bounded (tm, tn) slab (f32 for accuracy;
    # VPU/EUP are not the binding slot here).
    h = jnp.dot(x_ref[...], w1_ref[...], preferred_element_type=jnp.float32)
    h = h + b1_ref[...]
    g = _gelu_new(h)

    # Partial fc2 product, accumulated in f32.
    acc_ref[...] += jnp.dot(g.astype(w2_ref.dtype), w2_ref[...],
                            preferred_element_type=jnp.float32)

    @pl.when(j == pl.num_programs(1) - 1)
    def _():
        o_ref[...] = (acc_ref[...] + b2_ref[...]).astype(o_ref.dtype)


def phi2_mlp(hidden_states, w1, b1, w2, b2, *, tm=None, tn=None,
             compute_dtype=jnp.bfloat16):
    """Phi-2 MLP: fc2(gelu_new(fc1(x))).

    hidden_states: [B, S, D].  Weights stored [in, out] (transposed vs. torch
    nn.Linear): w1: [D, 4D], b1: [4D], w2: [4D, D], b2: [D].
    For best performance store w1/w2 already in `compute_dtype` (the wrapper
    then passes them through without an extra HBM-sized convert pass).
    """
    B, S, D = hidden_states.shape
    n_inner = w1.shape[1]
    out_dtype = hidden_states.dtype
    T = B * S

    tm_def, tn_def, vmem_cap, n_cores = _tpu_generation_defaults()
    tm = tm_def if tm is None else tm
    tn = tn_def if tn is None else tn
    vmem_limit_cap = int(0.75 * vmem_cap)      # leave headroom for compiler scratch

    # ---- inner (n_inner) tile ------------------------------------------------
    if n_inner <= tn:
        tn = n_inner
        n_inner_pad = n_inner
    else:
        tn = max(128, tn - tn % 128)           # lane-aligned inner tile
        n_inner_pad = _round_up(n_inner, tn)   # pad instead of full-weight fallback

    # ---- row tile --------------------------------------------------------------
    tm = min(tm, _round_up(T, 16))
    tm = max(16, _round_up(tm, 16))            # sublane-friendly for bf16/f32
    # Keep both TensorCores busy for short sequences on 2-TC parts (v7x).
    if n_cores >= 2 and T > 16 and _round_up(T, tm) // tm < n_cores:
        tm = max(16, _round_up((T + n_cores - 1) // n_cores, 16))

    isz = jnp.dtype(compute_dtype).itemsize
    osz = jnp.dtype(out_dtype).itemsize

    def _tile_vmem(tm_, tn_):
        return (2 * (tm_ * D * isz             # x tile (double-buffered)
                     + D * tn_ * isz           # W1 tile
                     + tn_ * D * isz           # W2 tile
                     + tn_ * 4 + D * 4         # bias tiles
                     + tm_ * D * osz)          # out tile
                + tm_ * D * 4                  # f32 accumulator
                + 4 * tm_ * tn_ * 4)           # h/g intermediates headroom

    # Shrink tm until the footprint fits under the per-generation cap.
    while tm > 128 and _tile_vmem(tm, tn) > vmem_limit_cap:
        tm = max(128, _round_up(tm // 2, 16))

    T_pad = _round_up(T, tm)

    # ---- operand preparation ------------------------------------------------
    x2d = hidden_states.reshape(T, D)
    if x2d.dtype != compute_dtype:
        x2d = x2d.astype(compute_dtype)
    if T_pad != T:
        x2d = jnp.pad(x2d, ((0, T_pad - T), (0, 0)))

    # No-op when weights are already stored in compute_dtype (recommended).
    w1c = w1 if w1.dtype == compute_dtype else w1.astype(compute_dtype)
    w2c = w2 if w2.dtype == compute_dtype else w2.astype(compute_dtype)
    b1_2d = b1.reshape(1, n_inner).astype(jnp.float32)
    b2_2d = b2.reshape(1, D).astype(jnp.float32)

    # Zero-pad the inner dimension so tn always divides it.  Padded W1 columns
    # give h = 0 -> gelu_new(0) = 0 -> zero contribution through the padded
    # (zero) rows of W2, so the result is unchanged.
    if n_inner_pad != n_inner:
        pad = n_inner_pad - n_inner
        w1c = jnp.pad(w1c, ((0, 0), (0, pad)))
        b1_2d = jnp.pad(b1_2d, ((0, 0), (0, pad)))
        w2c = jnp.pad(w2c, ((0, pad), (0, 0)))

    grid = (T_pad // tm, n_inner_pad // tn)

    # ---- VMEM budget / cost hint --------------------------------------------
    vmem_bytes = _tile_vmem(tm, tn)
    vmem_limit = int(min(max(int(1.25 * vmem_bytes), 32 << 20), vmem_limit_cap))

    cost = pl.CostEstimate(
        flops=4 * T_pad * D * n_inner_pad,
        transcendentals=T_pad * n_inner_pad,
        bytes_accessed=(x2d.size * isz
                        + grid[0] * (w1c.size * isz + w2c.size * isz)  # re-read per row tile
                        + b1_2d.size * 4 + b2_2d.size * 4
                        + T_pad * D * osz),
    )

    out2d = pl.pallas_call(
        _mlp_kernel,
        out_shape=jax.ShapeDtypeStruct((T_pad, D), out_dtype),
        grid_spec=pltpu.PrefetchScalarGridSpec(
            num_scalar_prefetch=0,
            grid=grid,
            in_specs=[
                pl.BlockSpec((tm, D), lambda i, j: (i, 0)),    # x (reused over j)
                pl.BlockSpec((D, tn), lambda i, j: (0, j)),    # W1 column tile
                pl.BlockSpec((1, tn), lambda i, j: (0, j)),    # b1 slice
                pl.BlockSpec((tn, D), lambda i, j: (j, 0)),    # W2 row tile
                pl.BlockSpec((1, D), lambda i, j: (0, 0)),     # b2 (constant)
            ],
            out_specs=pl.BlockSpec((tm, D), lambda i, j: (i, 0)),
            scratch_shapes=[pltpu.VMEM((tm, D), jnp.float32)],
        ),
        compiler_params=pltpu.CompilerParams(
            dimension_semantics=("parallel", "arbitrary"),
            vmem_limit_bytes=vmem_limit,
        ),
        cost_estimate=cost,
    )(x2d, w1c, b1_2d, w2c, b2_2d)

    return out2d[:T].reshape(B, S, D)


if __name__ == "__main__":
    # Small config consistent with the module: n_embd=32 -> n_inner=128.
    B, S, n_embd = 2, 8, 32
    n_inner = 4 * n_embd

    key = jax.random.PRNGKey(0)
    kx, kw1, kb1, kw2, kb2 = jax.random.split(key, 5)

    x = jax.random.normal(kx, (B, S, n_embd), dtype=jnp.float32)

    # Deterministic synthetic params (nn.Linear-like scale), stored [in, out].
    w1_f32 = jax.random.normal(kw1, (n_embd, n_inner), dtype=jnp.float32) / math.sqrt(n_embd)
    b1 = jax.random.normal(kb1, (n_inner,), dtype=jnp.float32) * 0.01
    w2_f32 = jax.random.normal(kw2, (n_inner, n_embd), dtype=jnp.float32) / math.sqrt(n_inner)
    b2 = jax.random.normal(kb2, (n_embd,), dtype=jnp.float32) * 0.01

    # Hoisted (one-time) weight cast to the kernel compute dtype.
    w1 = w1_f32.astype(jnp.bfloat16)
    w2 = w2_f32.astype(jnp.bfloat16)

    out = jax.block_until_ready(phi2_mlp(x, w1, b1, w2, b2))
    assert out.shape == (B, S, n_embd)

    # Reference following the same precision path (bf16 matmul inputs,
    # f32 accumulation) as the kernel.
    cd = jnp.bfloat16
    xb = x.reshape(-1, n_embd).astype(cd)
    h = jnp.dot(xb, w1, preferred_element_type=jnp.float32) + b1
    g = _gelu_new(h)
    ref = (jnp.dot(g.astype(cd), w2, preferred_element_type=jnp.float32)
           + b2).reshape(B, S, n_embd)
    assert jnp.allclose(out, ref, atol=1e-2, rtol=1e-2), \
        float(jnp.max(jnp.abs(out - ref)))

    # Also sanity-check against the pure f32 reference with bf16-level tolerance.
    h32 = x.reshape(-1, n_embd) @ w1_f32 + b1
    ref32 = (_gelu_new(h32) @ w2_f32 + b2).reshape(B, S, n_embd)
    assert jnp.allclose(out, ref32, atol=5e-2, rtol=5e-2), \
        float(jnp.max(jnp.abs(out - ref32)))

    print("KERNEL_OK")
</pallas_src>

<mosaic_0001>
module attributes {stable_mosaic.version = 11 : i64} {
  func.func @_mlp_kernel(%arg0: i32, %arg1: i32, %arg2: memref<16x32xbf16, #tpu.memory_space<vmem>>, %arg3: memref<32x128xbf16, #tpu.memory_space<vmem>>, %arg4: memref<1x128xf32, #tpu.memory_space<vmem>>, %arg5: memref<128x32xbf16, #tpu.memory_space<vmem>>, %arg6: memref<1x32xf32, #tpu.memory_space<vmem>>, %arg7: memref<16x32xf32, #tpu.memory_space<vmem>>, %arg8: memref<16x32xf32, #tpu.memory_space<vmem>>) attributes {dimension_semantics = [#tpu.dimension_semantics<parallel>, #tpu.dimension_semantics<arbitrary>], iteration_bounds = array<i64: 1, 1>, scalar_prefetch = 0 : i64, scratch_operands = 1 : i64, tpu.core_type = #tpu.core_type<tc>, window_params = [{transform_indices = @transform_0, window_bounds = array<i64: 16, 32>}, {transform_indices = @transform_1, window_bounds = array<i64: 32, 128>}, {transform_indices = @transform_2, window_bounds = array<i64: 1, 128>}, {transform_indices = @transform_3, window_bounds = array<i64: 128, 32>}, {pipeline_mode = #tpu.pipeline_mode<synchronous>, transform_indices = @transform_4, window_bounds = array<i64: 1, 32>}, {transform_indices = @transform_5, window_bounds = array<i64: 16, 32>}]} {
    %c0_i32 = arith.constant 0 : i32
    %0 = arith.cmpi eq, %arg1, %c0_i32 : i32
    %1 = arith.extui %0 : i1 to i32
    %c0_i32_0 = arith.constant 0 : i32
    %2 = arith.cmpi ne, %1, %c0_i32_0 : i32
    scf.if %2 {
      %cst_19 = arith.constant 0.000000e+00 : f32
      %31 = vector.broadcast %cst_19 : f32 to vector<16x32xf32>
      %c0_20 = arith.constant 0 : index
      %c0_21 = arith.constant 0 : index
      %32 = vector.load %arg8[%c0_20, %c0_21] : memref<16x32xf32, #tpu.memory_space<vmem>>, vector<16x32xf32>
      tpu.vector_store %arg8[%c0_20, %c0_21], %31 {strides = array<i32>} : memref<16x32xf32, #tpu.memory_space<vmem>>, vector<16x32xf32>,
    } else {
    }
    %c0 = arith.constant 0 : index
    %c0_1 = arith.constant 0 : index
    %3 = vector.load %arg2[%c0, %c0_1] : memref<16x32xbf16, #tpu.memory_space<vmem>>, vector<16x32xbf16>
    %c0_2 = arith.constant 0 : index
    %c0_3 = arith.constant 0 : index
    %4 = vector.load %arg3[%c0_2, %c0_3] : memref<32x128xbf16, #tpu.memory_space<vmem>>, vector<32x128xbf16>
    %cst = arith.constant dense<0.000000e+00> : vector<16x128xf32>
    %5 = tpu.matmul %3, %4, %cst {dimension_numbers = #tpu.dot_dimension_numbers<[1], [0], [0], [1], [0, 0, 1, 1], [], []>} : vector<16x32xbf16>, vector<32x128xbf16>, vector<16x128xf32> -> vector<16x128xf32>
    %c0_4 = arith.constant 0 : index
    %c0_5 = arith.constant 0 : index
    %6 = vector.load %arg4[%c0_4, %c0_5] : memref<1x128xf32, #tpu.memory_space<vmem>>, vector<1x128xf32>
    %7 = vector.broadcast %6 : vector<1x128xf32> to vector<16x128xf32>
    %8 = arith.addf %5, %7 : vector<16x128xf32>
    %cst_6 = arith.constant 5.000000e-01 : f32
    %9 = vector.broadcast %cst_6 : f32 to vector<16x128xf32>
    %10 = arith.mulf %9, %8 : vector<16x128xf32>
    %cst_7 = arith.constant 4.471500e-02 : f32
    %11 = vector.broadcast %cst_7 : f32 to vector<16x128xf32>
    %12 = arith.mulf %11, %8 : vector<16x128xf32>
    %13 = arith.mulf %12, %8 : vector<16x128xf32>
    %14 = arith.mulf %13, %8 : vector<16x128xf32>
    %15 = arith.addf %8, %14 : vector<16x128xf32>
    %cst_8 = arith.constant 0.797884583 : f32
    %16 = vector.broadcast %cst_8 : f32 to vector<16x128xf32>
    %17 = arith.mulf %16, %15 : vector<16x128xf32>
    %18 = math.tanh %17 : vector<16x128xf32>
    %cst_9 = arith.constant 1.000000e+00 : f32
    %19 = vector.broadcast %cst_9 : f32 to vector<16x128xf32>
    %20 = arith.addf %19, %18 : vector<16x128xf32>
    %21 = arith.mulf %10, %20 : vector<16x128xf32>
    %c0_10 = arith.constant 0 : index
    %c0_11 = arith.constant 0 : index
    %22 = vector.load %arg8[%c0_10, %c0_11] : memref<16x32xf32, #tpu.memory_space<vmem>>, vector<16x32xf32>
    %23 = arith.truncf %21 : vector<16x128xf32> to vector<16x128xbf16>
    %c0_12 = arith.constant 0 : index
    %c0_13 = arith.constant 0 : index
    %24 = vector.load %arg5[%c0_12, %c0_13] : memref<128x32xbf16, #tpu.memory_space<vmem>>, vector<128x32xbf16>
    %cst_14 = arith.constant dense<0.000000e+00> : vector<16x32xf32>
    %25 = tpu.matmul %23, %24, %cst_14 {dimension_numbers = #tpu.dot_dimension_numbers<[1], [0], [0], [1], [0, 0, 1, 1], [], []>} : vector<16x128xbf16>, vector<128x32xbf16>, vector<16x32xf32> -> vector<16x32xf32>
    %26 = arith.addf %22, %25 : vector<16x32xf32>
    %c0_15 = arith.constant 0 : index
    %c0_16 = arith.constant 0 : index
    %27 = vector.load %arg8[%c0_15, %c0_16] : memref<16x32xf32, #tpu.memory_space<vmem>>, vector<16x32xf32>
    tpu.vector_store %arg8[%c0_15, %c0_16], %26 {strides = array<i32>} : memref<16x32xf32, #tpu.memory_space<vmem>>, vector<16x32xf32>,
    %c0_i32_17 = arith.constant 0 : i32
    %28 = arith.cmpi eq, %arg1, %c0_i32_17 : i32
    %29 = arith.extui %28 : i1 to i32
    %c0_i32_18 = arith.constant 0 : i32
    %30 = arith.cmpi ne, %29, %c0_i32_18 : i32
    scf.if %30 {
      %c0_19 = arith.constant 0 : index
      %c0_20 = arith.constant 0 : index
      %31 = vector.load %arg8[%c0_19, %c0_20] : memref<16x32xf32, #tpu.memory_space<vmem>>, vector<16x32xf32>
      %c0_21 = arith.constant 0 : index
      %c0_22 = arith.constant 0 : index
      %32 = vector.load %arg6[%c0_21, %c0_22] : memref<1x32xf32, #tpu.memory_space<vmem>>, vector<1x32xf32>
      %33 = vector.broadcast %32 : vector<1x32xf32> to vector<16x32xf32>
      %34 = arith.addf %31, %33 : vector<16x32xf32>
      %c0_23 = arith.constant 0 : index
      %c0_24 = arith.constant 0 : index
      %35 = vector.load %arg7[%c0_23, %c0_24] : memref<16x32xf32, #tpu.memory_space<vmem>>, vector<16x32xf32>
      tpu.vector_store %arg7[%c0_23, %c0_24], %34 {strides = array<i32>} : memref<16x32xf32, #tpu.memory_space<vmem>>, vector<16x32xf32>,
    } else {
    }
    return
  }
  func.func @transform_0(%arg0: i32, %arg1: i32) -> (i32, i32) {
    %c0_i32 = arith.constant 0 : i32
    %c0_i32_0 = arith.constant 0 : i32
    return %arg0, %c0_i32 : i32, i32
  }
  func.func @transform_1(%arg0: i32, %arg1: i32) -> (i32, i32) {
    %c0_i32 = arith.constant 0 : i32
    %c0_i32_0 = arith.constant 0 : i32
    return %c0_i32, %arg1 : i32, i32
  }
  func.func @transform_2(%arg0: i32, %arg1: i32) -> (i32, i32) {
    %c0_i32 = arith.constant 0 : i32
    %c0_i32_0 = arith.constant 0 : i32
    return %c0_i32, %arg1 : i32, i32
  }
  func.func @transform_3(%arg0: i32, %arg1: i32) -> (i32, i32) {
    %c0_i32 = arith.constant 0 : i32
    %c0_i32_0 = arith.constant 0 : i32
    return %arg1, %c0_i32 : i32, i32
  }
  func.func @transform_4(%arg0: i32, %arg1: i32) -> (i32, i32) {
    %c0_i32 = arith.constant 0 : i32
    %c0_i32_0 = arith.constant 0 : i32
    %c0_i32_1 = arith.constant 0 : i32
    return %c0_i32, %c0_i32_0 : i32, i32
  }
  func.func @transform_5(%arg0: i32, %arg1: i32) -> (i32, i32) {
    %c0_i32 = arith.constant 0 : i32
    %c0_i32_0 = arith.constant 0 : i32
    return %arg0, %c0_i32 : i32, i32
  }
}

</mosaic_0001>

<llo_original>
// kernel: tpu_custom_call.1
$region0: #{tpu_custom_call.1}
  #allocation0 [shape = 'u32[]', space=smem, size = 0x4, offset = 0x4, fixed_abs, tag = 'smem constant byte address 0x4 - core index']
  #allocation1 [shape = 'u32[144,128]{1,0:T(1,128)}', space=vmem, size = 0x12000, scoped, tag = 'internal scratch']
  #allocation2 [shape = 'f32[16,32]{1,0:T(8,128)}', space=vmem, size = 0x2000, scoped, tag = 'scratch operand']
  %s0 = inlined_call_operand.vmem [shape: bf16[16,32], index: 0, kind: input, shape index: {}]
  %s1 = inlined_call_operand.vmem [shape: bf16[32,128], index: 1, kind: input, shape index: {}]
  %s2 = inlined_call_operand.vmem [shape: f32[1,128], index: 2, kind: input, shape index: {}]
  %s3 = inlined_call_operand.vmem [shape: bf16[128,32], index: 3, kind: input, shape index: {}]
  %s4 = inlined_call_operand.vmem [shape: f32[1,32], index: 4, kind: input, shape index: {}]
  %s5 = inlined_call_operand.hbm [shape: f32[16,32], index: 5, kind: output, shape index: {}]
  %s6 = sld [smem:[#allocation0]]
  $region38: #{tpu_custom_call.1} parent=0
    _
  %s8 = ssub.s32 1, %s6
  %s9 = scalar_select 0, %s8, %s6
  $region1: #{tpu_custom_call.1} parent=0
    #allocation3 [shape = 'u8[8192]{0}', space=vmem, size = 0x2000, scoped, tag = 'output window, operand 0, single buffered']
    #allocation4 [shape = 's32[1]{0}', space=sflag, size = 0x4, scoped, tag = 'scoped memory for tpu_custom_call.1']
    %10 = vsyncpa [#allocation4], 0
    // Predicated region
    $region2: #{tpu_custom_call.1} parent=1 // pred_check
      _
    $region3: #{tpu_custom_call.1} parent=1 // pred_check_branch
      %12 = sbr.rel (0) target = $region5
    $region4: #{tpu_custom_call.1} parent=1 // pred_region
      _
    $region5: #{tpu_custom_call.1} parent=1 // pred_fallthru
      _
    // Predicated region
    $region6: #{tpu_custom_call.1} parent=1 // pred_check
      _
    $region7: #{tpu_custom_call.1} parent=1 // pred_check_branch
      %14 = sbr.rel (0) target = $region9
    $region8: #{tpu_custom_call.1} parent=1 // pred_region
      _
    $region9: #{tpu_custom_call.1} parent=1 // pred_fallthru
      _
    // Predicated region
    $region10: #{tpu_custom_call.1} parent=1 // pred_check
      _
    $region11: #{tpu_custom_call.1} parent=1 // pred_check_branch
      %16 = sbr.rel (0) target = $region13
    $region12: #{tpu_custom_call.1} parent=1 // pred_region
      _
    $region13: #{tpu_custom_call.1} parent=1 // pred_fallthru
      _
    // Predicated region
    $region14: #{tpu_custom_call.1} parent=1 // pred_check
      _
    $region15: #{tpu_custom_call.1} parent=1 // pred_check_branch
      %18 = sbr.rel (0) target = $region17
    $region16: #{tpu_custom_call.1} parent=1 // pred_region
      _
    $region17: #{tpu_custom_call.1} parent=1 // pred_fallthru
      _
    // Predicated region
    $region18: #{tpu_custom_call.1} parent=1 // pred_check
      _
    $region19: #{tpu_custom_call.1} parent=1 // pred_check_branch
      %20 = sbr.rel (0) target = $region21
    $region20: #{tpu_custom_call.1} parent=1 // pred_region
      _
    $region21: #{tpu_custom_call.1} parent=1 // pred_fallthru
      _
    %p22 = scmp.eq.s32.totalorder 0, 0
    // Predicated region
    $region22: #{tpu_custom_call.1} parent=1 // pred_check
      %p23 = pneg %p22
    $region23: #{tpu_custom_call.1} parent=1 // pred_check_branch
      %25 = sbr.rel (%p23) target = $region25
    $region24: #{tpu_custom_call.1} parent=1 // pred_region
      %vm26 = vcmask 261120
      %27 = vst.msk [vmem:[#allocation2] sm:$0xff] %vm26, 0.0
      %28 = vst.msk [vmem:[#allocation2 + $0x8] sm:$0xff] %vm26, 0.0
    $region25: #{tpu_custom_call.1} parent=1 // pred_fallthru
      _
    %v29 = vld [vmem:[%s0] sm:$0xf]
    %v30 = vld [vmem:[%s0 + $0x4] sm:$0xf]
    %v31 = vld [vmem:[%s1] sm:$0xf]
    %v32 = vld [vmem:[%s1 + $0x4] sm:$0xf]
    %v33 = vld [vmem:[%s1 + $0x8] sm:$0xf]
    %v34 = vld [vmem:[%s1 + $0xc] sm:$0xf]
    %v35 = vld [vmem:[%s2] sm:$0x1]
    %v37 = vlaneseq
    %v38 = vshrl.u32 %v37, 7
    %v39 = vsub.s32 0, %v38
    %v40 = vrot.slane %v35, %v39
    %v44 = vunpack.c.l.b16 %v29
    %v45 = vunpack.c.l.b16 %v30
    %v46 = vpack.c.b16 %v45, %v44
    %v51 = vunpack.c.l.b16 %v31
    %v52 = vunpack.c.l.b16 %v32
    %v53 = vunpack.c.l.b16 %v33
    %v54 = vunpack.c.l.b16 %v34
    %v55 = vpack.c.b16 %v52, %v51
    %v56 = vpack.c.b16 %v54, %v53
    %vm59 = vcmask 261120
    %v61 = vsel %vm59, %v46, 0
    %63 = vmatprep.subr.bf16.mxu0 0
    %64 = vmatpush1.bf16.msra.mxu0 0
    %65 = vmatprep.subr.bf16.mxu0 0
    %66 = vmatpush1.bf16.msra.mxu0 0
    %67 = vmatprep.subr.bf16.mxu0 0
    %68 = vmatpush1.bf16.msra.mxu0 0
    %69 = vmatprep.subr.bf16.mxu0 0
    %70 = vmatpush1.bf16.msra.mxu0 0
    %71 = vmatprep.subr.bf16.mxu0 0
    %72 = vmatpush1.bf16.msra.mxu0 0
    %73 = vmatprep.subr.bf16.mxu0 0
    %74 = vmatpush1.bf16.msra.mxu0 0
    %75 = vmatprep.subr.bf16.mxu0 0
    %76 = vmatpush1.bf16.msra.mxu0 %v56
    %77 = vmatprep.subr.bf16.mxu0 0
    %78 = vmatpush1.bf16.msra.mxu0 %v55
    %79 = vmatprep.subr.bf16.mxu0 0
    %80 = vmatpush2.bf16.msra.mxu0 0
    %81 = vmatprep.subr.bf16.mxu0 0
    %82 = vmatpush2.bf16.msra.mxu0 0
    %83 = vmatprep.subr.bf16.mxu0 0
    %84 = vmatpush2.bf16.msra.mxu0 0
    %85 = vmatprep.subr.bf16.mxu0 0
    %86 = vmatpush2.bf16.msra.mxu0 0
    %87 = vmatprep.subr.bf16.mxu0 0
    %88 = vmatpush2.bf16.msra.mxu0 0
    %89 = vmatprep.subr.bf16.mxu0 0
    %90 = vmatpush2.bf16.msra.mxu0 0
    %91 = vmatprep.subr.bf16.mxu0 0
    %92 = vmatpush2.bf16.msra.mxu0 0
    %93 = vmatprep.subr.bf16.mxu0 0
    %94 = vmatpush2.bf16.msra.mxu0 0
    %95 = vmatprep.mubr.bf16.mxu0 0
    %96 = vmatmul.mubr.bf16.gmra.mxu0 %v61
    %v97 = vpop.f32.mrf.mxu0
    %v98 = vadd.f32 %v40, %v97
    %v99 = vpop.f32.mrf.mxu0
    %v100 = vpop.f32.mrf.mxu0
    %v101 = vadd.f32 %v40, %v100
    %v102 = vpop.f32.mrf.mxu0
    %103 = vdwg.mxu0
    %v104 = vmul.f32 %v98, 0.5
    %v105 = vmul.f32 %v101, 0.5
    %v106 = vmul.f32 %v98, 0.044715
    %v107 = vmul.f32 %v101, 0.044715
    %v108 = vmul.f32 %v106, %v98
    %v109 = vmul.f32 %v107, %v101
    %v110 = vmul.f32 %v108, %v98
    %v111 = vmul.f32 %v109, %v101
    %v112 = vadd.f32 %v98, %v110
    %v113 = vadd.f32 %v101, %v111
    %v114 = vmul.f32 %v112, 0.7978846
    %v115 = vmul.f32 %v113, 0.7978846
    %v116 = vtanh.pop %v114
    %v117 = vtanh.pop %v115
    %v118 = vadd.f32 %v116, 1.0
    %v119 = vadd.f32 %v117, 1.0
    %v120 = vmul.f32 %v104, %v118
    %v121 = vmul.f32 %v105, %v119
    %v122 = vld [vmem:[#allocation2] sm:$0xff]
    %v123 = vld [vmem:[#allocation2 + $0x8] sm:$0xff]
    %v124 = vpack.c.bf16 %v121, %v120
    %v125 = vld [vmem:[%s3] sm:$0xf]
    %v126 = vld [vmem:[%s3 + $0x4] sm:$0xf]
    %v127 = vld [vmem:[%s3 + $0x8] sm:$0xf]
    %v128 = vld [vmem:[%s3 + $0xc] sm:$0xf]
    %v129 = vld [vmem:[%s3 + $0x10] sm:$0xf]
    %v130 = vld [vmem:[%s3 + $0x14] sm:$0xf]
    %v131 = vld [vmem:[%s3 + $0x18] sm:$0xf]
    %v132 = vld [vmem:[%s3 + $0x1c] sm:$0xf]
    %v133 = vld [vmem:[%s3 + $0x20] sm:$0xf]
    %v134 = vld [vmem:[%s3 + $0x24] sm:$0xf]
    %v135 = vld [vmem:[%s3 + $0x28] sm:$0xf]
    %v136 = vld [vmem:[%s3 + $0x2c] sm:$0xf]
    %v137 = vld [vmem:[%s3 + $0x30] sm:$0xf]
    %v138 = vld [vmem:[%s3 + $0x34] sm:$0xf]
    %v139 = vld [vmem:[%s3 + $0x38] sm:$0xf]
    %v140 = vld [vmem:[%s3 + $0x3c] sm:$0xf]
    %v157 = vunpack.c.l.b16 %v125
    %v158 = vunpack.c.l.b16 %v126
    %v159 = vunpack.c.l.b16 %v127
    %v160 = vunpack.c.l.b16 %v128
    %v161 = vunpack.c.l.b16 %v129
    %v162 = vunpack.c.l.b16 %v130
    %v163 = vunpack.c.l.b16 %v131
    %v164 = vunpack.c.l.b16 %v132
    %v165 = vunpack.c.l.b16 %v133
    %v166 = vunpack.c.l.b16 %v134
    %v167 = vunpack.c.l.b16 %v135
    %v168 = vunpack.c.l.b16 %v136
    %v169 = vunpack.c.l.b16 %v137
    %v170 = vunpack.c.l.b16 %v138
    %v171 = vunpack.c.l.b16 %v139
    %v172 = vunpack.c.l.b16 %v140
    %v173 = vpack.c.b16 %v158, %v157
    %v174 = vpack.c.b16 %v160, %v159
    %v175 = vpack.c.b16 %v162, %v161
    %v176 = vpack.c.b16 %v164, %v163
    %v177 = vpack.c.b16 %v166, %v165
    %v178 = vpack.c.b16 %v168, %v167
    %v179 = vpack.c.b16 %v170, %v169
    %v180 = vpack.c.b16 %v172, %v171
    %189 = vmatprep.subr.bf16.mxu0 0
    %190 = vmatpush1.bf16.msra.mxu0 %v180
    %191 = vmatprep.subr.bf16.mxu0 0
    %192 = vmatpush1.bf16.msra.mxu0 %v179
    %193 = vmatprep.subr.bf16.mxu0 0
    %194 = vmatpush1.bf16.msra.mxu0 %v178
    %195 = vmatprep.subr.bf16.mxu0 0
    %196 = vmatpush1.bf16.msra.mxu0 %v177
    %197 = vmatprep.subr.bf16.mxu0 0
    %198 = vmatpush1.bf16.msra.mxu0 %v176
    %199 = vmatprep.subr.bf16.mxu0 0
    %200 = vmatpush1.bf16.msra.mxu0 %v175
    %201 = vmatprep.subr.bf16.mxu0 0
    %202 = vmatpush1.bf16.msra.mxu0 %v174
    %203 = vmatprep.subr.bf16.mxu0 0
    %204 = vmatpush1.bf16.msra.mxu0 %v173
    %205 = vmatprep.subr.bf16.mxu0 0
    %206 = vmatpush2.bf16.msra.mxu0 0
    %207 = vmatprep.subr.bf16.mxu0 0
    %208 = vmatpush2.bf16.msra.mxu0 0
    %209 = vmatprep.subr.bf16.mxu0 0
    %210 = vmatpush2.bf16.msra.mxu0 0
    %211 = vmatprep.subr.bf16.mxu0 0
    %212 = vmatpush2.bf16.msra.mxu0 0
    %213 = vmatprep.subr.bf16.mxu0 0
    %214 = vmatpush2.bf16.msra.mxu0 0
    %215 = vmatprep.subr.bf16.mxu0 0
    %216 = vmatpush2.bf16.msra.mxu0 0
    %217 = vmatprep.subr.bf16.mxu0 0
    %218 = vmatpush2.bf16.msra.mxu0 0
    %219 = vmatprep.subr.bf16.mxu0 0
    %220 = vmatpush2.bf16.msra.mxu0 0
    %221 = vmatprep.mubr.bf16.mxu0 0
    %222 = vmatmul.mubr.bf16.gmra.mxu0 %v124
    %v223 = vpop.f32.mrf.mxu0
    %v224 = vadd.f32 0.0, %v223
    %v225 = vpop.f32.mrf.mxu0
    %v226 = vpop.f32.mrf.mxu0
    %v227 = vadd.f32 0.0, %v226
    %v228 = vpop.f32.mrf.mxu0
    %229 = vdwg.mxu0
    %v230 = vadd.f32 %v122, %v224
    %v231 = vadd.f32 %v123, %v227
    %232 = vst.msk [vmem:[#allocation2] sm:$0xff] %vm59, %v230
    %233 = vst.msk [vmem:[#allocation2 + $0x8] sm:$0xff] %vm59, %v231
    // Predicated region
    $region26: #{tpu_custom_call.1} parent=1 // pred_check
      %p234 = pneg %p22
    $region27: #{tpu_custom_call.1} parent=1 // pred_check_branch
      %236 = sbr.rel (%p234) target = $region29
    $region28: #{tpu_custom_call.1} parent=1 // pred_region
      %v237 = vld [vmem:[#allocation2] sm:$0xff]
      %v238 = vld [vmem:[#allocation2 + $0x8] sm:$0xff]
      %v239 = vld [vmem:[%s4] sm:$0x1]
      %v241 = vlaneseq
      %v242 = vshrl.u32 %v241, 7
      %v243 = vsub.s32 0, %v242
      %v244 = vrot.slane %v239, %v243
      %v246 = vadd.f32 %v237, %v244
      %v247 = vadd.f32 %v238, %v244
      %248 = vst.msk [vmem:[#allocation3] sm:$0xff] %vm59, %v246
      %249 = vst.msk [vmem:[#allocation3 + $0x8] sm:$0xff] %vm59, %v247
    $region29: #{tpu_custom_call.1} parent=1 // pred_fallthru
      _
    // Predicated region
    $region30: #{tpu_custom_call.1} parent=1 // pred_check
      _
    $region31: #{tpu_custom_call.1} parent=1 // pred_check_branch
      %251 = sbr.rel (0) target = $region33
    $region32: #{tpu_custom_call.1} parent=1 // pred_region
      %s253 = ssub.s32 256, 256
      %254 = vsyncadd [#allocation4], %s253
      %s255 = sshll.u32 [#allocation3], 4
      %s256 = int_to_ptr.vmem [resolvable:$true] %s255
      %261 = dma.vmem_to_hbm [thread:$0]  %s256, 256, %s5, [#allocation4], 128, 128, 8
    $region33: #{tpu_custom_call.1} parent=1 // pred_fallthru
      _
    // Predicated region
    $region34: #{tpu_custom_call.1} parent=1 // pred_check
      _
    $region35: #{tpu_custom_call.1} parent=1 // pred_check_branch
      %263 = sbr.rel (0) target = $region37
    $region36: #{tpu_custom_call.1} parent=1 // pred_region
      %264 = dma.done [#allocation4], 256
    $region37: #{tpu_custom_call.1} parent=1 // pred_fallthru
      _
    %265 = vsyncpa [#allocation4], 1

</llo_original>
